<compile_context>
chip_gen: v6e
topology: v6e:2x2x1
jax: 0.10.0
libtpu: 0.0.40
codegen_flags: <defaults>
</compile_context>

<pallas_src>
import functools

import jax
import jax.numpy as jnp
from jax.experimental import pallas as pl
from jax.experimental.pallas import tpu as pltpu


def _lm_criterion_kernel(x_ref, tgt_ref, msk_ref, out_ref,
                         m_acc, l_acc, t_acc,
                         *, vocab_size, lane_mask_needed):
    """One (row_tile, vocab_tile) step of the masked-NLL reduction.

    x_ref:   (TR, TV) logits tile (f32 or bf16)
    tgt_ref: (TR, 1)  int32 target ids for these rows
    msk_ref: (TR, 1)  f32 0/1 length mask for these rows
    out_ref: (TR, 1)  f32 per-row masked NLL (written on last vocab tile)
    m_acc / l_acc / t_acc: (TR, 1) f32 scratch (running max, running sum-exp,
                            accumulated target logit)
    """
    v = pl.program_id(1)
    n_v = pl.num_programs(1)

    @pl.when(v == 0)
    def _():
        m_acc[...] = jnp.full_like(m_acc, -jnp.inf)
        l_acc[...] = jnp.zeros_like(l_acc)
        t_acc[...] = jnp.zeros_like(t_acc)

    x = x_ref[...].astype(jnp.float32)          # per-tile upcast (bf16 path)
    tr, tv = x.shape

    # Local lane iota; shift the comparands instead of the iota (saves one
    # VALU add per element per tile vs. building global vocab ids).
    lane_ids = jax.lax.broadcasted_iota(jnp.int32, (tr, tv), 1)

    # --- target logit via select-sum (no logp / one-hot materialization) ---
    # Contract: targets must be in [0, V).  Out-of-range targets match no
    # lane (t_acc stays 0) — harmless only for length-masked rows.
    # TODO(synk): on v7x consider hoisting this to a wrapper-side gather if it
    # lowers to a real gather (not an O(N*V) one-hot); saves ~2 VALU ops/elem.
    tgt_local = tgt_ref[...] - v * tv            # (TR, 1), broadcasts over lanes
    t_acc[...] += jnp.sum(jnp.where(lane_ids == tgt_local, x, 0.0),
                          axis=1, keepdims=True)

    def lse_update(xm):
        m_prev = m_acc[...]
        m_new = jnp.maximum(m_prev, jnp.max(xm, axis=1, keepdims=True))
        alpha = jnp.exp(m_prev - m_new)
        l_acc[...] = alpha * l_acc[...] + jnp.sum(jnp.exp(xm - m_new),
                                                  axis=1, keepdims=True)
        m_acc[...] = m_new

    if lane_mask_needed:
        # Ragged last vocab tile: pay the compare+select only there; all other
        # vocab tiles take the maskless path.
        @pl.when(v < n_v - 1)
        def _():
            lse_update(x)

        @pl.when(v == n_v - 1)
        def _():
            valid = lane_ids < (vocab_size - v * tv)     # scalar RHS
            lse_update(jnp.where(valid, x, -jnp.inf))
    else:
        lse_update(x)

    @pl.when(v == n_v - 1)
    def _():
        lse = m_acc[...] + jnp.log(l_acc[...])
        nll = lse - t_acc[...]
        # where (not multiply) so garbage rows of a partial row tile cannot
        # inject NaN/inf; out-of-bounds rows are dropped by masked writeback.
        out_ref[...] = jnp.where(msk_ref[...] > 0.5, nll, 0.0)


def _choose_tiles(n_rows, vocab, itemsize, block_budget_bytes=16 << 20):
    """Pick (row_tile, vocab_tile).

    * row tile: multiple of 8 (or full N), sized so there are >= 2 row tiles
      whenever N > 8 (lets the 'parallel' axis shard across v7x's two TCs).
    * vocab tile: sized so one logits block is ~<= block_budget_bytes
      (16 MiB * 2 for double buffering stays under the explicit vmem limit on
      every generation); prefer a multiple of 128 that exactly divides V so
      the last tile is not ragged and no lane masking is needed.
    """
    # --- row tile ---
    if n_rows <= 8:
        tr = n_rows                                 # can't split below a sublane
    elif n_rows < 512:
        tr = max(8, (n_rows // 2) // 8 * 8)         # ensures cdiv(N, tr) >= 2
    else:
        tr = 256
    # --- vocab tile ---
    tv_cap = max(128, (block_budget_bytes // (tr * itemsize)) // 128 * 128)
    if vocab <= tv_cap:
        return tr, vocab                            # single (full-dim) vocab tile
    tv = tv_cap
    for cand in range(tv_cap, max(127, tv_cap // 2 - 1), -128):
        if vocab % cand == 0:                       # exact divisor -> no ragged tile
            tv = cand
            break
    return tr, tv


def language_model_criterion(inputs, targets, cap_lens, *,
                             row_tile=None, vocab_tile=None):
    """Pallas equivalent of LanguageModelCriterion.forward.

    inputs:   (B, S, V) float32 / bfloat16 logits
    targets:  (B, S)    integer word indices (must lie in [0, V))
    cap_lens: (B,)      integer caption lengths
    returns:  scalar float32 loss.  (If all cap_lens are 0 the result is
              NaN/inf, identical to the PyTorch reference's divide-by-zero.)
    """
    B, S, V = inputs.shape
    N = B * S

    if not jnp.issubdtype(inputs.dtype, jnp.floating):
        inputs = inputs.astype(jnp.float32)
    x2d = inputs.reshape(N, V)
    tgt2d = targets.astype(jnp.int32).reshape(N, 1)

    # Length mask + denominator: cheap O(B*S) plain-JAX work.
    seq_ids = jax.lax.broadcasted_iota(jnp.int32, (B, S), 1)
    mask = (seq_ids < cap_lens.astype(jnp.int32)[:, None]).astype(jnp.float32)
    den = jnp.sum(mask)
    msk2d = mask.reshape(N, 1)

    itemsize = x2d.dtype.itemsize                    # real itemsize (bf16 fix)
    tr, tv = _choose_tiles(N, V, itemsize)
    if row_tile is not None:
        tr = row_tile
    if vocab_tile is not None:
        tv = vocab_tile
    num_r = pl.cdiv(N, tr)
    num_v = pl.cdiv(V, tv)
    lane_mask_needed = (V % tv != 0)

    kernel = functools.partial(
        _lm_criterion_kernel,
        vocab_size=V,
        lane_mask_needed=lane_mask_needed,
    )

    # Explicit scoped-VMEM limit: 2x logits double-buffer + margin, capped at
    # 48 MiB (inside v7x's 64 MiB physical VMEM, safe on v5e/v6e).
    logits_block_bytes = tr * tv * itemsize
    vmem_limit = int(min(48 << 20, max(32 << 20,
                                       2 * logits_block_bytes + (4 << 20))))

    cost = pl.CostEstimate(
        flops=6 * N * V,                 # max/sub/exp-fold + eq/select/fold
        transcendentals=N * V,           # exp
        bytes_accessed=N * V * itemsize + 4 * N * 4,
    )

    per_row_nll = pl.pallas_call(
        kernel,
        out_shape=jax.ShapeDtypeStruct((N, 1), jnp.float32),
        grid=(num_r, num_v),
        in_specs=[
            pl.BlockSpec((tr, tv), lambda r, v: (r, v)),   # streamed logits
            pl.BlockSpec((tr, 1), lambda r, v: (r, 0)),    # targets (per row tile)
            pl.BlockSpec((tr, 1), lambda r, v: (r, 0)),    # length mask
        ],
        out_specs=pl.BlockSpec((tr, 1), lambda r, v: (r, 0)),
        scratch_shapes=[
            pltpu.VMEM((tr, 1), jnp.float32),   # running max
            pltpu.VMEM((tr, 1), jnp.float32),   # running sum-exp
            pltpu.VMEM((tr, 1), jnp.float32),   # accumulated target logit
        ],
        compiler_params=pltpu.CompilerParams(
            dimension_semantics=("parallel", "arbitrary"),
            vmem_limit_bytes=vmem_limit),
        cost_estimate=cost,
    )(x2d, tgt2d, msk2d)

    # TODO(synk): with heavily padded captions, use PrefetchScalarGridSpec with
    # a cap_lens-derived schedule so fully-masked row tiles are never DMA'd.
    return jnp.sum(per_row_nll) / den


def _reference_loss(inputs, targets, cap_lens):
    """Pure-JAX reference mirroring the PyTorch module."""
    B, S, V = inputs.shape
    logp = jax.nn.log_softmax(inputs.astype(jnp.float32), axis=2)
    picked = jnp.take_along_axis(logp, targets[:, :, None].astype(jnp.int32),
                                 axis=2)[:, :, 0]
    mask = (jnp.arange(S)[None, :] < cap_lens[:, None]).astype(jnp.float32)
    return jnp.sum(-picked * mask) / jnp.sum(mask)


if __name__ == "__main__":
    key = jax.random.PRNGKey(0)

    # --- test 1: baseline small shapes (2 row tiles, single vocab tile) ---
    B, S, V = 2, 8, 32
    k1, k2 = jax.random.split(key)
    inputs = jax.random.normal(k1, (B, S, V), dtype=jnp.float32)
    targets = jax.random.randint(k2, (B, S), minval=0, maxval=V, dtype=jnp.int32)
    cap_lens = jnp.array([5, 8], dtype=jnp.int32)

    loss = jax.block_until_ready(language_model_criterion(inputs, targets, cap_lens))
    ref = jax.block_until_ready(_reference_loss(inputs, targets, cap_lens))
    assert jnp.allclose(loss, ref, atol=1e-5, rtol=1e-5), (loss, ref)

    # --- test 2: ragged vocab + partial row tiles (last-tile-only lane mask) ---
    B2, S2, V2 = 3, 7, 200
    k3, k4 = jax.random.split(k1)
    inputs2 = jax.random.normal(k3, (B2, S2, V2), dtype=jnp.float32)
    targets2 = jax.random.randint(k4, (B2, S2), minval=0, maxval=V2, dtype=jnp.int32)
    cap_lens2 = jnp.array([7, 3, 5], dtype=jnp.int32)
    loss2 = jax.block_until_ready(
        language_model_criterion(inputs2, targets2, cap_lens2,
                                 row_tile=8, vocab_tile=128))
    ref2 = jax.block_until_ready(_reference_loss(inputs2, targets2, cap_lens2))
    assert jnp.allclose(loss2, ref2, atol=1e-5, rtol=1e-5), (loss2, ref2)

    # --- test 3: multi vocab tile with exact divisor (maskless online LSE) ---
    B3, S3, V3 = 2, 8, 256
    k5, k6 = jax.random.split(k3)
    inputs3 = jax.random.normal(k5, (B3, S3, V3), dtype=jnp.float32)
    targets3 = jax.random.randint(k6, (B3, S3), minval=0, maxval=V3, dtype=jnp.int32)
    cap_lens3 = jnp.array([8, 4], dtype=jnp.int32)
    loss3 = jax.block_until_ready(
        language_model_criterion(inputs3, targets3, cap_lens3,
                                 row_tile=8, vocab_tile=128))
    ref3 = jax.block_until_ready(_reference_loss(inputs3, targets3, cap_lens3))
    assert jnp.allclose(loss3, ref3, atol=1e-5, rtol=1e-5), (loss3, ref3)

    # --- test 4: bf16 logits path (half HBM traffic; correct itemsize in tiling) ---
    inputs_bf16 = inputs.astype(jnp.bfloat16)
    loss4 = jax.block_until_ready(
        language_model_criterion(inputs_bf16, targets, cap_lens))
    ref4 = jax.block_until_ready(
        _reference_loss(inputs_bf16.astype(jnp.float32), targets, cap_lens))
    assert jnp.allclose(loss4, ref4, atol=1e-4, rtol=1e-4), (loss4, ref4)

    print("KERNEL_OK")
</pallas_src>

<mosaic_0001>
module attributes {stable_mosaic.version = 11 : i64} {
  func.func @_lm_criterion_kernel(%arg0: i32, %arg1: i32, %arg2: memref<8x32xf32, #tpu.memory_space<vmem>>, %arg3: memref<8x1xi32, #tpu.memory_space<vmem>>, %arg4: memref<8x1xf32, #tpu.memory_space<vmem>>, %arg5: memref<8x1xf32, #tpu.memory_space<vmem>>, %arg6: memref<8x1xf32, #tpu.memory_space<vmem>>, %arg7: memref<8x1xf32, #tpu.memory_space<vmem>>, %arg8: memref<8x1xf32, #tpu.memory_space<vmem>>) attributes {dimension_semantics = [#tpu.dimension_semantics<parallel>, #tpu.dimension_semantics<arbitrary>], iteration_bounds = array<i64: 2, 1>, scalar_prefetch = 0 : i64, scratch_operands = 3 : i64, tpu.core_type = #tpu.core_type<tc>, window_params = [{transform_indices = @transform_0, window_bounds = array<i64: 8, 32>}, {transform_indices = @transform_1, window_bounds = array<i64: 8, 1>}, {transform_indices = @transform_2, window_bounds = array<i64: 8, 1>}, {transform_indices = @transform_3, window_bounds = array<i64: 8, 1>}]} {
    %c0_i32 = arith.constant 0 : i32
    %0 = arith.cmpi eq, %arg1, %c0_i32 : i32
    %1 = arith.extui %0 : i1 to i32
    %c0_i32_0 = arith.constant 0 : i32
    %2 = arith.cmpi ne, %1, %c0_i32_0 : i32
    scf.if %2 {
      %cst_21 = arith.constant 0xFF800000 : f32
      %37 = vector.broadcast %cst_21 : f32 to vector<8x1xf32>
      %c0_22 = arith.constant 0 : index
      %c0_23 = arith.constant 0 : index
      %38 = vector.load %arg6[%c0_22, %c0_23] : memref<8x1xf32, #tpu.memory_space<vmem>>, vector<8x1xf32>
      tpu.vector_store %arg6[%c0_22, %c0_23], %37 {strides = array<i32>} : memref<8x1xf32, #tpu.memory_space<vmem>>, vector<8x1xf32>,
      %cst_24 = arith.constant 0.000000e+00 : f32
      %39 = vector.broadcast %cst_24 : f32 to vector<8x1xf32>
      %c0_25 = arith.constant 0 : index
      %c0_26 = arith.constant 0 : index
      %40 = vector.load %arg7[%c0_25, %c0_26] : memref<8x1xf32, #tpu.memory_space<vmem>>, vector<8x1xf32>
      tpu.vector_store %arg7[%c0_25, %c0_26], %39 {strides = array<i32>} : memref<8x1xf32, #tpu.memory_space<vmem>>, vector<8x1xf32>,
      %cst_27 = arith.constant 0.000000e+00 : f32
      %41 = vector.broadcast %cst_27 : f32 to vector<8x1xf32>
      %c0_28 = arith.constant 0 : index
      %c0_29 = arith.constant 0 : index
      %42 = vector.load %arg8[%c0_28, %c0_29] : memref<8x1xf32, #tpu.memory_space<vmem>>, vector<8x1xf32>
      tpu.vector_store %arg8[%c0_28, %c0_29], %41 {strides = array<i32>} : memref<8x1xf32, #tpu.memory_space<vmem>>, vector<8x1xf32>,
    } else {
    }
    %c0 = arith.constant 0 : index
    %c0_1 = arith.constant 0 : index
    %3 = vector.load %arg2[%c0, %c0_1] : memref<8x32xf32, #tpu.memory_space<vmem>>, vector<8x32xf32>
    %4 = tpu.iota {dimensions = array<i32: 1>} : vector<8x32xi32>
    %c0_2 = arith.constant 0 : index
    %c0_3 = arith.constant 0 : index
    %5 = vector.load %arg3[%c0_2, %c0_3] : memref<8x1xi32, #tpu.memory_space<vmem>>, vector<8x1xi32>
    %c32_i32 = arith.constant 32 : i32
    %6 = arith.muli %arg1, %c32_i32 : i32
    %7 = vector.broadcast %6 : i32 to vector<8x1xi32>
    %8 = arith.subi %5, %7 : vector<8x1xi32>
    %c0_4 = arith.constant 0 : index
    %c0_5 = arith.constant 0 : index
    %9 = vector.load %arg8[%c0_4, %c0_5] : memref<8x1xf32, #tpu.memory_space<vmem>>, vector<8x1xf32>
    %10 = vector.broadcast %8 : vector<8x1xi32> to vector<8x32xi32>
    %11 = arith.cmpi eq, %4, %10 : vector<8x32xi32>
    %cst = arith.constant 0.000000e+00 : f32
    %12 = vector.broadcast %cst : f32 to vector<8x32xf32>
    %13 = arith.select %11, %3, %12 : vector<8x32xi1>, vector<8x32xf32>
    %cst_6 = arith.constant dense<0.000000e+00> : vector<8xf32>
    %14 = vector.multi_reduction <add>, %13, %cst_6 [1] : vector<8x32xf32> to vector<8xf32>
    %15 = vector.shape_cast %14 : vector<8xf32> to vector<8x1xf32>
    %16 = arith.addf %9, %15 : vector<8x1xf32>
    %c0_7 = arith.constant 0 : index
    %c0_8 = arith.constant 0 : index
    %17 = vector.load %arg8[%c0_7, %c0_8] : memref<8x1xf32, #tpu.memory_space<vmem>>, vector<8x1xf32>
    tpu.vector_store %arg8[%c0_7, %c0_8], %16 {strides = array<i32>} : memref<8x1xf32, #tpu.memory_space<vmem>>, vector<8x1xf32>,
    %c0_9 = arith.constant 0 : index
    %c0_10 = arith.constant 0 : index
    %18 = vector.load %arg6[%c0_9, %c0_10] : memref<8x1xf32, #tpu.memory_space<vmem>>, vector<8x1xf32>
    %cst_11 = arith.constant dense<0xFF800000> : vector<8xf32>
    %19 = vector.multi_reduction <maximumf>, %3, %cst_11 [1] : vector<8x32xf32> to vector<8xf32>
    %20 = vector.shape_cast %19 : vector<8xf32> to vector<8x1xf32>
    %21 = arith.maximumf %18, %20 : vector<8x1xf32>
    %22 = arith.subf %18, %21 : vector<8x1xf32>
    %23 = math.exp %22 : vector<8x1xf32>
    %c0_12 = arith.constant 0 : index
    %c0_13 = arith.constant 0 : index
    %24 = vector.load %arg7[%c0_12, %c0_13] : memref<8x1xf32, #tpu.memory_space<vmem>>, vector<8x1xf32>
    %25 = arith.mulf %23, %24 : vector<8x1xf32>
    %26 = vector.broadcast %21 : vector<8x1xf32> to vector<8x32xf32>
    %27 = arith.subf %3, %26 : vector<8x32xf32>
    %28 = math.exp %27 : vector<8x32xf32>
    %cst_14 = arith.constant dense<0.000000e+00> : vector<8xf32>
    %29 = vector.multi_reduction <add>, %28, %cst_14 [1] : vector<8x32xf32> to vector<8xf32>
    %30 = vector.shape_cast %29 : vector<8xf32> to vector<8x1xf32>
    %31 = arith.addf %25, %30 : vector<8x1xf32>
    %c0_15 = arith.constant 0 : index
    %c0_16 = arith.constant 0 : index
    %32 = vector.load %arg7[%c0_15, %c0_16] : memref<8x1xf32, #tpu.memory_space<vmem>>, vector<8x1xf32>
    tpu.vector_store %arg7[%c0_15, %c0_16], %31 {strides = array<i32>} : memref<8x1xf32, #tpu.memory_space<vmem>>, vector<8x1xf32>,
    %c0_17 = arith.constant 0 : index
    %c0_18 = arith.constant 0 : index
    %33 = vector.load %arg6[%c0_17, %c0_18] : memref<8x1xf32, #tpu.memory_space<vmem>>, vector<8x1xf32>
    tpu.vector_store %arg6[%c0_17, %c0_18], %21 {strides = array<i32>} : memref<8x1xf32, #tpu.memory_space<vmem>>, vector<8x1xf32>,
    %c0_i32_19 = arith.constant 0 : i32
    %34 = arith.cmpi eq, %arg1, %c0_i32_19 : i32
    %35 = arith.extui %34 : i1 to i32
    %c0_i32_20 = arith.constant 0 : i32
    %36 = arith.cmpi ne, %35, %c0_i32_20 : i32
    scf.if %36 {
      %c0_21 = arith.constant 0 : index
      %c0_22 = arith.constant 0 : index
      %37 = vector.load %arg6[%c0_21, %c0_22] : memref<8x1xf32, #tpu.memory_space<vmem>>, vector<8x1xf32>
      %c0_23 = arith.constant 0 : index
      %c0_24 = arith.constant 0 : index
      %38 = vector.load %arg7[%c0_23, %c0_24] : memref<8x1xf32, #tpu.memory_space<vmem>>, vector<8x1xf32>
      %39 = math.log %38 : vector<8x1xf32>
      %40 = arith.addf %37, %39 : vector<8x1xf32>
      %c0_25 = arith.constant 0 : index
      %c0_26 = arith.constant 0 : index
      %41 = vector.load %arg8[%c0_25, %c0_26] : memref<8x1xf32, #tpu.memory_space<vmem>>, vector<8x1xf32>
      %42 = arith.subf %40, %41 : vector<8x1xf32>
      %c0_27 = arith.constant 0 : index
      %c0_28 = arith.constant 0 : index
      %43 = vector.load %arg4[%c0_27, %c0_28] : memref<8x1xf32, #tpu.memory_space<vmem>>, vector<8x1xf32>
      %cst_29 = arith.constant 5.000000e-01 : f32
      %44 = vector.broadcast %cst_29 : f32 to vector<8x1xf32>
      %45 = arith.cmpf ogt, %43, %44 : vector<8x1xf32>
      %cst_30 = arith.constant 0.000000e+00 : f32
      %46 = vector.broadcast %cst_30 : f32 to vector<8x1xf32>
      %47 = arith.select %45, %42, %46 : vector<8x1xi1>, vector<8x1xf32>
      %c0_31 = arith.constant 0 : index
      %c0_32 = arith.constant 0 : index
      %48 = vector.load %arg5[%c0_31, %c0_32] : memref<8x1xf32, #tpu.memory_space<vmem>>, vector<8x1xf32>
      tpu.vector_store %arg5[%c0_31, %c0_32], %47 {strides = array<i32>} : memref<8x1xf32, #tpu.memory_space<vmem>>, vector<8x1xf32>,
    } else {
    }
    return
  }
  func.func @transform_0(%arg0: i32, %arg1: i32) -> (i32, i32) {
    %c0_i32 = arith.constant 0 : i32
    return %arg0, %arg1 : i32, i32
  }
  func.func @transform_1(%arg0: i32, %arg1: i32) -> (i32, i32) {
    %c0_i32 = arith.constant 0 : i32
    %c0_i32_0 = arith.constant 0 : i32
    return %arg0, %c0_i32 : i32, i32
  }
  func.func @transform_2(%arg0: i32, %arg1: i32) -> (i32, i32) {
    %c0_i32 = arith.constant 0 : i32
    %c0_i32_0 = arith.constant 0 : i32
    return %arg0, %c0_i32 : i32, i32
  }
  func.func @transform_3(%arg0: i32, %arg1: i32) -> (i32, i32) {
    %c0_i32 = arith.constant 0 : i32
    %c0_i32_0 = arith.constant 0 : i32
    return %arg0, %c0_i32 : i32, i32
  }
}

</mosaic_0001>

<llo_original>
// kernel: tpu_custom_call.1
$region0: #{tpu_custom_call.1}
  #allocation0 [shape = 'u32[]', space=smem, size = 0x4, offset = 0x4, fixed_abs, tag = 'smem constant byte address 0x4 - core index']
  #allocation1 [shape = 'u32[144,128]{1,0:T(1,128)}', space=vmem, size = 0x12000, scoped, tag = 'internal scratch']
  #allocation2 [shape = 'f32[8,1]{1,0:T(8,128)}', space=vmem, size = 0x1000, scoped, tag = 'scratch operand']
  #allocation3 [shape = 'f32[8,1]{1,0:T(8,128)}', space=vmem, size = 0x1000, scoped, tag = 'scratch operand']
  #allocation4 [shape = 'f32[8,1]{1,0:T(8,128)}', space=vmem, size = 0x1000, scoped, tag = 'scratch operand']
  %s0 = inlined_call_operand.vmem [shape: f32[16,32], index: 0, kind: input, shape index: {}]
  %s1 = inlined_call_operand.vmem [shape: s32[16,1], index: 1, kind: input, shape index: {}]
  %s2 = inlined_call_operand.vmem [shape: f32[16,1], index: 2, kind: input, shape index: {}]
  %s3 = inlined_call_operand.vmem [shape: f32[16,1], index: 3, kind: output, shape index: {}]
  %s4 = sld [smem:[#allocation0]]
  $region53: #{tpu_custom_call.1} parent=0
    _
  %s6 = ssub.s32 1, %s4
  %s7 = scalar_select 0, %s6, %s4
  loop: start=0, step=1, limit=4
  $region2: #{tpu_custom_call.1} parent=0 // loop_pre_header
    _
  $region3: #{tpu_custom_call.1} parent=0 // loop_header
    %s9 = sphi 0, %s13
    %p10 = scmp.ge.s32.totalorder %s9, 4
    %s16 = sphi 0, %s28
    %s17 = sphi 0, %s24
    %s18 = sphi 0, %s16
    %s19 = sphi 0, %s17
    %s20 = sphi 0, %s18
    %s21 = sphi 0, %s19
    %s33 = sphi 0, %s35
    %s36 = sphi 0, %s33
    %s37 = sphi 0, %s36
    %s53 = sphi 0, %s37
    %s59 = sphi 0, %s61
    %s62 = sphi 0, %s59
    %s63 = sphi 0, %s62
    %s79 = sphi 0, %s63
    %s85 = sphi 0, %s87
    %s88 = sphi 0, %s85
    %s89 = sphi 0, %s88
    %s105 = sphi 0, %s89
    %s111 = sphi 0, %s113
    %s114 = sphi 0, %s111
    %s115 = sphi 0, %s114
    %s131 = sphi 0, %s115
  $region4: #{tpu_custom_call.1} parent=0 // loop_header_branch
    %12 = sbr.rel (%p10) target = $region8
  $region5: #{tpu_custom_call.1} parent=0 // loop_body
    %s14 = ssub.s32 %s9, 1
    %s15 = ssub.s32 %s9, 2
    %s22 = sadd.s32 1, %s17
    %p23 = scmp.ge.s32.totalorder %s22, 1
    %s24 = scalar_select %p23, 0, %s22
    %s25 = sadd.s32 1, %s16
    %s26 = scalar_select %p23, %s25, %s16
    %p27 = scmp.ge.s32.totalorder %s26, 2
    %s28 = scalar_select %p27, 0, %s26
    %s29 = ssub.s32 %s16, %s28
    %s30 = ssub.s32 %s17, %s24
    %s31 = sor.u32 %s29, %s30
    %p32 = scmp.eq.s32.totalorder %s31, 0
    %s34 = sadd.s32 %s33, 1
    %s35 = scalar_select %p32, %s33, %s34
    %p38 = pneg %p32
    %p39 = scmp.eq.s32.totalorder %s9, 1
    %p40 = por %p38, %p39
    %p41 = scmp.ne.s32.totalorder %s33, %s36
    %p42 = scmp.eq.s32.totalorder %s9, 0
    %p43 = por %p41, %p42
    %p44 = scmp.ne.s32.totalorder %s33, %s36
    %p45 = scmp.eq.s32.totalorder %s14, 1
    %p46 = por %p44, %p45
    %p47 = scmp.ne.s32.totalorder %s36, %s37
    %p48 = scmp.eq.s32.totalorder %s14, 0
    %p49 = por %p47, %p48
    %p50 = scmp.ne.s32.totalorder %s36, %s37
    %p51 = scmp.eq.s32.totalorder %s15, 1
    %p52 = por %p50, %p51
    %p54 = scmp.ne.s32.totalorder %s37, %s53
    %p55 = scmp.eq.s32.totalorder %s15, 0
    %p56 = por %p54, %p55
    %s57 = ssub.s32 %s16, %s28
    %p58 = scmp.eq.s32.totalorder %s57, 0
    %s60 = sadd.s32 %s59, 1
    %s61 = scalar_select %p58, %s59, %s60
    %p64 = pneg %p58
    %p65 = scmp.eq.s32.totalorder %s9, 1
    %p66 = por %p64, %p65
    %p67 = scmp.ne.s32.totalorder %s59, %s62
    %p68 = scmp.eq.s32.totalorder %s9, 0
    %p69 = por %p67, %p68
    %p70 = scmp.ne.s32.totalorder %s59, %s62
    %p71 = scmp.eq.s32.totalorder %s14, 1
    %p72 = por %p70, %p71
    %p73 = scmp.ne.s32.totalorder %s62, %s63
    %p74 = scmp.eq.s32.totalorder %s14, 0
    %p75 = por %p73, %p74
    %p76 = scmp.ne.s32.totalorder %s62, %s63
    %p77 = scmp.eq.s32.totalorder %s15, 1
    %p78 = por %p76, %p77
    %p80 = scmp.ne.s32.totalorder %s63, %s79
    %p81 = scmp.eq.s32.totalorder %s15, 0
    %p82 = por %p80, %p81
    %s83 = ssub.s32 %s16, %s28
    %p84 = scmp.eq.s32.totalorder %s83, 0
    %s86 = sadd.s32 %s85, 1
    %s87 = scalar_select %p84, %s85, %s86
    %p90 = pneg %p84
    %p91 = scmp.eq.s32.totalorder %s9, 1
    %p92 = por %p90, %p91
    %p93 = scmp.ne.s32.totalorder %s85, %s88
    %p94 = scmp.eq.s32.totalorder %s9, 0
    %p95 = por %p93, %p94
    %p96 = scmp.ne.s32.totalorder %s85, %s88
    %p97 = scmp.eq.s32.totalorder %s14, 1
    %p98 = por %p96, %p97
    %p99 = scmp.ne.s32.totalorder %s88, %s89
    %p100 = scmp.eq.s32.totalorder %s14, 0
    %p101 = por %p99, %p100
    %p102 = scmp.ne.s32.totalorder %s88, %s89
    %p103 = scmp.eq.s32.totalorder %s15, 1
    %p104 = por %p102, %p103
    %p106 = scmp.ne.s32.totalorder %s89, %s105
    %p107 = scmp.eq.s32.totalorder %s15, 0
    %p108 = por %p106, %p107
    %s109 = ssub.s32 %s16, %s28
    %p110 = scmp.eq.s32.totalorder %s109, 0
    %s112 = sadd.s32 %s111, 1
    %s113 = scalar_select %p110, %s111, %s112
    %p116 = pneg %p110
    %p117 = scmp.eq.s32.totalorder %s9, 1
    %p118 = por %p116, %p117
    %p119 = scmp.ne.s32.totalorder %s111, %s114
    %p120 = scmp.eq.s32.totalorder %s9, 0
    %p121 = por %p119, %p120
    %p122 = scmp.ne.s32.totalorder %s111, %s114
    %p123 = scmp.eq.s32.totalorder %s14, 1
    %p124 = por %p122, %p123
    %p125 = scmp.ne.s32.totalorder %s114, %s115
    %p126 = scmp.eq.s32.totalorder %s14, 0
    %p127 = por %p125, %p126
    %p128 = scmp.ne.s32.totalorder %s114, %s115
    %p129 = scmp.eq.s32.totalorder %s15, 1
    %p130 = por %p128, %p129
    %p132 = scmp.ne.s32.totalorder %s115, %s131
    %p133 = scmp.eq.s32.totalorder %s15, 0
    %p134 = por %p132, %p133
    %p135 = scmp.le.s32.totalorder 1, %s9
    %p136 = scmp.lt.s32.totalorder %s9, 3
    %p137 = pnand %p135, %p136
    %p138 = pneg %p137
    // Predicated region
    $region9: #{tpu_custom_call.1} parent=5 // pred_check
      _
    $region10: #{tpu_custom_call.1} parent=5 // pred_check_branch
      %140 = sbr.rel (%p137) target = $region12
    $region11: #{tpu_custom_call.1} parent=5 // pred_region
      %s141 = ssub.s32 %s9, 1
    $region12: #{tpu_custom_call.1} parent=5 // pred_fallthru
      _
    %p142 = scmp.lt.s32.totalorder %s9, 2
    // Predicated region
    $region13: #{tpu_custom_call.1} parent=5 // pred_check
      %p143 = pneg %p142
    $region14: #{tpu_custom_call.1} parent=5 // pred_check_branch
      %145 = sbr.rel (%p143) target = $region16
    $region15: #{tpu_custom_call.1} parent=5 // pred_region
      // Predicated region
      $region17: #{tpu_custom_call.1} parent=15 // pred_check
        %p146 = pneg %p43
      $region18: #{tpu_custom_call.1} parent=15 // pred_check_branch
        %148 = sbr.rel (%p146) target = $region20
      $region19: #{tpu_custom_call.1} parent=15 // pred_region
        %p149 = scmp.lt.s32.totalorder %s16, 1
        %s150 = scalar_select %p149, %s16, 1
        %p151 = scmp.lt.s32.totalorder %s17, 0
        %s152 = scalar_select %p151, %s17, 0
        %s153 = sadd.s32 %s152, %s150
        %s154 = smul.addr %s153, 8
        %s155 = scalar_lea.vmem %s0, %s154
      $region20: #{tpu_custom_call.1} parent=15 // pred_fallthru
        _
      // Predicated region
      $region21: #{tpu_custom_call.1} parent=15 // pred_check
        %p156 = pneg %p69
      $region22: #{tpu_custom_call.1} parent=15 // pred_check_branch
        %158 = sbr.rel (%p156) target = $region24
      $region23: #{tpu_custom_call.1} parent=15 // pred_region
        %p159 = scmp.lt.s32.totalorder %s16, 1
        %s160 = scalar_select %p159, %s16, 1
        %s161 = smul.addr %s160, 8
        %s162 = scalar_lea.vmem %s1, %s161
      $region24: #{tpu_custom_call.1} parent=15 // pred_fallthru
        _
      // Predicated region
      $region25: #{tpu_custom_call.1} parent=15 // pred_check
        %p163 = pneg %p95
      $region26: #{tpu_custom_call.1} parent=15 // pred_check_branch
        %165 = sbr.rel (%p163) target = $region28
      $region27: #{tpu_custom_call.1} parent=15 // pred_region
        %p166 = scmp.lt.s32.totalorder %s16, 1
        %s167 = scalar_select %p166, %s16, 1
        %s168 = smul.addr %s167, 8
        %s169 = scalar_lea.vmem %s2, %s168
      $region28: #{tpu_custom_call.1} parent=15 // pred_fallthru
        _
    $region16: #{tpu_custom_call.1} parent=5 // pred_fallthru
      _
    %p170 = scmp.le.s32.totalorder 1, %s9
    %p171 = scmp.lt.s32.totalorder %s9, 3
    %p172 = pnand %p170, %p171
    %p173 = pneg %p172
    // Predicated region
    $region29: #{tpu_custom_call.1} parent=5 // pred_check
      _
    $region30: #{tpu_custom_call.1} parent=5 // pred_check_branch
      %175 = sbr.rel (%p172) target = $region32
    $region31: #{tpu_custom_call.1} parent=5 // pred_region
      %s176 = ssub.s32 %s9, 1
      %p177 = scmp.lt.s32.totalorder %s18, 1
      %s178 = scalar_select %p177, %s18, 1
      %p179 = scmp.lt.s32.totalorder %s19, 0
      %s180 = scalar_select %p179, %s19, 0
      %s181 = sadd.s32 %s180, %s178
      %s182 = smul.addr %s181, 8
      %s183 = scalar_lea.vmem %s0, %s182
      %p184 = pneg %p49
      %p185 = pneg %p46
      %p186 = scmp.lt.s32.totalorder %s18, 1
      %s187 = scalar_select %p186, %s18, 1
      %s188 = smul.addr %s187, 8
      %s189 = scalar_lea.vmem %s1, %s188
      %p190 = pneg %p75
      %p191 = pneg %p72
      %p192 = scmp.lt.s32.totalorder %s18, 1
      %s193 = scalar_select %p192, %s18, 1
      %s194 = smul.addr %s193, 8
      %s195 = scalar_lea.vmem %s2, %s194
      %p196 = pneg %p101
      %p197 = pneg %p98
      %p198 = pneg %p127
      %p199 = pneg %p124
      %p200 = scmp.lt.s32.totalorder %s18, 1
      %s201 = scalar_select %p200, %s18, 1
      %s202 = smul.addr %s201, 8
      %s203 = scalar_lea.vmem %s3, %s202
      %p204 = scmp.lt.s32.totalorder %s18, 1
      %s205 = scalar_select %p204, %s18, 1
      %p206 = scmp.lt.s32.totalorder %s19, 0
      %s207 = scalar_select %p206, %s19, 0
      %s208 = sadd.s32 %s207, %s205
      %s209 = smul.addr %s208, 8
      %s210 = scalar_lea.vmem %s0, %s209
      %p211 = scmp.lt.s32.totalorder %s18, 1
      %s212 = scalar_select %p211, %s18, 1
      %s213 = smul.addr %s212, 8
      %s214 = scalar_lea.vmem %s1, %s213
      %p215 = scmp.lt.s32.totalorder %s18, 1
      %s216 = scalar_select %p215, %s18, 1
      %s217 = smul.addr %s216, 8
      %s218 = scalar_lea.vmem %s2, %s217
      %p219 = scmp.lt.s32.totalorder %s18, 1
      %s220 = scalar_select %p219, %s18, 1
      %s221 = smul.addr %s220, 8
      %s222 = scalar_lea.vmem %s3, %s221
      %p223 = scmp.eq.s32.totalorder %s19, 0
      // Predicated region
      $region33: #{tpu_custom_call.1} parent=31 // pred_check
        %p224 = pneg %p223
      $region34: #{tpu_custom_call.1} parent=31 // pred_check_branch
        %226 = sbr.rel (%p224) target = $region36
      $region35: #{tpu_custom_call.1} parent=31 // pred_region
        %vm227 = vcmask 7168
        %228 = vst.msk [vmem:[#allocation2] sm:$0xff] %vm227, -inf
        %229 = vst.msk [vmem:[#allocation3] sm:$0xff] %vm227, 0.0
        %230 = vst.msk [vmem:[#allocation4] sm:$0xff] %vm227, 0.0
      $region36: #{tpu_custom_call.1} parent=31 // pred_fallthru
        _
      %v231 = vld [vmem:[%s210] sm:$0xff]
      %v232 = vlaneseq
      %v233 = vand.u32 %v232, 127
      %v234 = vld [vmem:[%s214] sm:$0xff]
      %s235 = smul.u32 %s19, 32
      %v236 = vstv %s235
      %v237 = vsub.s32 %v234, %v236
      %v238 = vld [vmem:[#allocation4] sm:$0xff]
      %239 = vset.pattern.permute.xlu0 0
      %240 = vperm.xlu0 %239, %v237
      %v241 = vpop.permute.xlu0 %240
      %vm242 = vcmp.eq.s32.totalorder %v233, %v241
      %v243 = vsel %vm242, %v231, 0.0
      %vm244 = vcmask 261120
      %v245 = vsel %vm244, %v243, 0.0
      %246 = vadd.xlane.f32.xlu0 %v245
      %v247 = vpop.xlane.xlu0 %246
      %v248 = vadd.f32 %v238, %v247
      %vm249 = vcmask 7168
      %250 = vst.msk [vmem:[#allocation4] sm:$0xff] %vm249, %v248
      %v251 = vld [vmem:[#allocation2] sm:$0xff]
      %v252 = vsel %vm244, %v231, -inf
      %253 = vmax.xlane.f32.xlu0 %v252
      %v254 = vpop.xlane.xlu0 %253
      %v255 = vmax.f32 %v251, %v254
      %v256 = vsub.f32 %v251, %v255
      %v257 = vmul.f32 %v256, 1.442695
      %v258 = vpow.pop %v257
      %v259 = vld [vmem:[#allocation3] sm:$0xff]
      %v260 = vmul.f32 %v258, %v259
      %262 = vset.pattern.permute.xlu0 0
      %263 = vperm.xlu0 %262, %v255
      %v264 = vpop.permute.xlu0 %263
      %v266 = vsub.f32 %v231, %v264
      %v267 = vmul.f32 %v266, 1.442695
      %v268 = vpow.pop %v267
      %v269 = vsel %vm244, %v268, 0.0
      %270 = vadd.xlane.f32.xlu0 %v269
      %v271 = vpop.xlane.xlu0 %270
      %v272 = vadd.f32 %v260, %v271
      %273 = vst.msk [vmem:[#allocation3] sm:$0xff] %vm249, %v272
      %274 = vst.msk [vmem:[#allocation2] sm:$0xff] %vm249, %v255
      // Predicated region
      $region37: #{tpu_custom_call.1} parent=31 // pred_check
        %p275 = pneg %p223
      $region38: #{tpu_custom_call.1} parent=31 // pred_check_branch
        %277 = sbr.rel (%p275) target = $region40
      $region39: #{tpu_custom_call.1} parent=31 // pred_region
        %v278 = vld [vmem:[#allocation2] sm:$0xff]
        %v279 = vld [vmem:[#allocation3] sm:$0xff]
        %v280 = vlog2.pop %v279
        %v281 = vmul.f32 %v280, 0.6931472
        %v282 = vadd.f32 %v278, %v281
        %v283 = vld [vmem:[#allocation4] sm:$0xff]
        %v284 = vsub.f32 %v282, %v283
        %v285 = vld [vmem:[%s218] sm:$0xff]
        %vm286 = vcmp.gt.f32.partialorder %v285, 0.5
        %v287 = vsel %vm286, %v284, 0.0
        %288 = vst.msk [vmem:[%s222] sm:$0xff] %vm249, %v287
      $region40: #{tpu_custom_call.1} parent=31 // pred_fallthru
        _
      %p289 = scmp.lt.s32.totalorder %s18, 1
      %s290 = scalar_select %p289, %s18, 1
      %s291 = smul.addr %s290, 8
      %s292 = scalar_lea.vmem %s3, %s291
      // Predicated region
      $region41: #{tpu_custom_call.1} parent=31 // pred_check
        %p293 = pneg %p124
      $region42: #{tpu_custom_call.1} parent=31 // pred_check_branch
        %295 = sbr.rel (%p293) target = $region44
      $region43: #{tpu_custom_call.1} parent=31 // pred_region
        _
      $region44: #{tpu_custom_call.1} parent=31 // pred_fallthru
        _
    $region32: #{tpu_custom_call.1} parent=5 // pred_fallthru
      _
    %p296 = scmp.le.s32.totalorder 2, %s9
    // Predicated region
    $region45: #{tpu_custom_call.1} parent=5 // pred_check
      %p297 = pneg %p296
    $region46: #{tpu_custom_call.1} parent=5 // pred_check_branch
      %299 = sbr.rel (%p297) target = $region48
    $region47: #{tpu_custom_call.1} parent=5 // pred_region
      %s300 = ssub.s32 %s9, 2
      // Predicated region
      $region49: #{tpu_custom_call.1} parent=47 // pred_check
        %p301 = pneg %p130
      $region50: #{tpu_custom_call.1} parent=47 // pred_check_branch
        %303 = sbr.rel (%p301) target = $region52
      $region51: #{tpu_custom_call.1} parent=47 // pred_region
        %p304 = scmp.lt.s32.totalorder %s20, 1
        %s305 = scalar_select %p304, %s20, 1
        %s306 = smul.addr %s305, 8
        %s307 = scalar_lea.vmem %s3, %s306
      $region52: #{tpu_custom_call.1} parent=47 // pred_fallthru
        _
    $region48: #{tpu_custom_call.1} parent=5 // pred_fallthru
      _
  $region6: #{tpu_custom_call.1} parent=0 // loop_footer
    %s13 = sadd.s32 1, %s9
  $region7: #{tpu_custom_call.1} parent=0 // loop_footer_branch
    %8 = sbr.rel target = $region3
  $region8: #{tpu_custom_call.1} parent=0 // loop_exit
    _

</llo_original>
